<compile_context>
chip_gen: v5e
topology: v5e:2x2
jax: 0.10.0
libtpu: 0.0.40
codegen_flags: <defaults>
</compile_context>

<pallas_src>
import math

import jax
import jax.numpy as jnp
from jax.experimental import pallas as pl
from jax.experimental.pallas import tpu as pltpu


def _gelu_new(x):
    # GPT-2 "gelu_new" (tanh approximation), matching HF / transformer_lens gelu_new.
    # x*x*x (two VPU multiplies) instead of pow(x, 3.0), keeping the single EUP slot
    # free for the tanh.
    c = math.sqrt(2.0 / math.pi)
    return 0.5 * x * (1.0 + jnp.tanh(c * (x + 0.044715 * (x * x * x))))


def _round_up(n, m):
    return ((n + m - 1) // m) * m


def _vmem_capacity_bytes(default=64 * 1024 * 1024):
    """Per-TensorCore VMEM capacity (v5e/v6e: 128 MiB, v7x: 64 MiB)."""
    try:
        info = pltpu.get_tpu_info()
        cap = int(getattr(info, "vmem_capacity_bytes", 0) or 0)
        if cap > 0:
            return cap
    except Exception:
        # Hardware query unavailable (e.g. abstract tracing) -> conservative default
        # that is safe on every generation (v7x's 64 MiB per TC).
        pass
    return default


# --------------------------------------------------------------------------- kernels

def _mlp_kernel_resident(x_ref, w_in_ref, b_in_ref, w_out_ref, b_out_ref, o_ref):
    # x_ref: (tm, d_model) token tile; weights fully resident in VMEM.
    pre = jnp.dot(x_ref[...], w_in_ref[...],
                  preferred_element_type=jnp.float32) + b_in_ref[...]
    post = _gelu_new(pre)  # f32 gelu (safe on v5e, which has no bf16 VPU/EUP)
    out = jnp.dot(post.astype(w_out_ref.dtype), w_out_ref[...],
                  preferred_element_type=jnp.float32) + b_out_ref[...]
    o_ref[...] = out.astype(o_ref.dtype)


def _mlp_kernel_tiled_inplace(x_ref, w_in_ref, b_in_ref, w_out_ref, b_out_ref, o_ref):
    # grid = (cdiv(M, tm), d_mlp // tn); d_mlp axis is a reduction ("arbitrary").
    # Output dtype is f32 -> accumulate directly into the resident output block.
    j = pl.program_id(1)

    @pl.when(j == 0)
    def _():
        o_ref[...] = jnp.broadcast_to(b_out_ref[...], o_ref.shape).astype(o_ref.dtype)

    pre = jnp.dot(x_ref[...], w_in_ref[...],
                  preferred_element_type=jnp.float32) + b_in_ref[...]
    post = _gelu_new(pre)
    o_ref[...] += jnp.dot(post.astype(w_out_ref.dtype), w_out_ref[...],
                          preferred_element_type=jnp.float32)


def _mlp_kernel_tiled_acc(x_ref, w_in_ref, b_in_ref, w_out_ref, b_out_ref, o_ref,
                          acc_ref):
    # Same as above, but output dtype is narrower than f32 -> use an f32 scratch
    # accumulator and cast once at finalize.
    j = pl.program_id(1)

    @pl.when(j == 0)
    def _():
        acc_ref[...] = jnp.zeros_like(acc_ref)

    pre = jnp.dot(x_ref[...], w_in_ref[...],
                  preferred_element_type=jnp.float32) + b_in_ref[...]
    post = _gelu_new(pre)
    acc_ref[...] += jnp.dot(post.astype(w_out_ref.dtype), w_out_ref[...],
                            preferred_element_type=jnp.float32)

    @pl.when(j == pl.num_programs(1) - 1)
    def _():
        o_ref[...] = (acc_ref[...] + b_out_ref[...]).astype(o_ref.dtype)


# --------------------------------------------------------------------------- builder

def _tiled_need_bytes(tm, tn, d_model, w_itemsize, x_itemsize, out_itemsize):
    return (2 * (d_model * tn + tn * d_model) * w_itemsize    # W_in/W_out blocks, double-buffered
            + 2 * (tn + d_model) * 4                           # bias blocks
            + 2 * tm * d_model * (x_itemsize + out_itemsize)   # x & out token tiles, double-buffered
            + tm * tn * 4                                      # f32 intermediate (pre/post)
            + tm * d_model * 4)                                 # f32 accumulator


def _choose_tiled_tiles(M, d_model, d_mlp, w_itemsize, x_itemsize, out_itemsize, budget):
    # Prefer large tn (keeps the 256-wide MXU fed on v6e/v7x) and the largest tm that
    # fits the budget (arithmetic intensity vs streamed weights ~ 2*tm/itemsize).
    tn_opts = [t for t in (1024, 512, 256, 128) if d_mlp % t == 0] or [d_mlp]
    tm_opts = (1024, 768, 512, 384, 256, 128, 64, 32, 16, 8)
    m_cap = _round_up(M, 8)
    for tn in tn_opts:
        for tm in tm_opts:
            tm_eff = min(tm, m_cap)
            if _tiled_need_bytes(tm_eff, tn, d_model, w_itemsize,
                                 x_itemsize, out_itemsize) <= budget:
                return tm_eff, tn
    return min(128, m_cap), tn_opts[-1]


def _build_and_run(x2d, w_in, b_in2d, w_out, b_out2d, *, out_dtype, tm, tn, tiled,
                   vmem_limit_bytes, cost_estimate):
    M, d_model = x2d.shape
    d_mlp = w_in.shape[1]
    grid_m = pl.cdiv(M, tm)

    if not tiled:
        grid = (grid_m,)
        in_specs = [
            pl.BlockSpec((tm, d_model), lambda i: (i, 0)),        # x token tile
            pl.BlockSpec((d_model, d_mlp), lambda i: (0, 0)),     # W_in (whole, resident)
            pl.BlockSpec((1, d_mlp), lambda i: (0, 0)),           # b_in
            pl.BlockSpec((d_mlp, d_model), lambda i: (0, 0)),     # W_out (whole, resident)
            pl.BlockSpec((1, d_model), lambda i: (0, 0)),         # b_out
        ]
        out_specs = pl.BlockSpec((tm, d_model), lambda i: (i, 0))
        scratch_shapes = []
        kernel = _mlp_kernel_resident
        dim_sem = ("parallel",)
    else:
        grid = (grid_m, d_mlp // tn)
        in_specs = [
            pl.BlockSpec((tm, d_model), lambda i, j: (i, 0)),     # x token tile
            pl.BlockSpec((d_model, tn), lambda i, j: (0, j)),     # W_in column block
            pl.BlockSpec((1, tn), lambda i, j: (0, j)),           # b_in block
            pl.BlockSpec((tn, d_model), lambda i, j: (j, 0)),     # W_out row block
            pl.BlockSpec((1, d_model), lambda i, j: (0, 0)),      # b_out
        ]
        out_specs = pl.BlockSpec((tm, d_model), lambda i, j: (i, 0))
        if jnp.dtype(out_dtype) == jnp.dtype(jnp.float32):
            kernel = _mlp_kernel_tiled_inplace
            scratch_shapes = []
        else:
            kernel = _mlp_kernel_tiled_acc
            scratch_shapes = [pltpu.VMEM((tm, d_model), jnp.float32)]
        dim_sem = ("parallel", "arbitrary")

    fn = pl.pallas_call(
        kernel,
        out_shape=jax.ShapeDtypeStruct((M, d_model), out_dtype),
        grid_spec=pltpu.PrefetchScalarGridSpec(
            num_scalar_prefetch=0,
            grid=grid,
            in_specs=in_specs,
            out_specs=out_specs,
            scratch_shapes=scratch_shapes,
        ),
        compiler_params=pltpu.CompilerParams(
            dimension_semantics=dim_sem,
            vmem_limit_bytes=vmem_limit_bytes,
        ),
        cost_estimate=cost_estimate,
    )
    return fn(x2d, w_in, b_in2d, w_out, b_out2d)


# --------------------------------------------------------------------------- wrapper

def mlp_forward(x, w_in, b_in, w_out, b_out, *, tm=None, tn=None,
                compute_dtype=jnp.bfloat16, force_tiled=False,
                vmem_budget_bytes=None):
    """GPT-2 MLP forward: [batch, position, d_model] -> [batch, position, d_model]."""
    batch, pos, d_model = x.shape
    d_mlp = w_in.shape[1]
    out_dtype = x.dtype

    # bf16 matmul inputs by default (f32 accumulation via preferred_element_type).
    if compute_dtype is not None:
        x = x.astype(compute_dtype)
        w_in = w_in.astype(compute_dtype)
        w_out = w_out.astype(compute_dtype)
    w_itemsize = jnp.dtype(w_in.dtype).itemsize
    x_itemsize = jnp.dtype(x.dtype).itemsize
    out_itemsize = jnp.dtype(out_dtype).itemsize

    M = batch * pos
    x2d = x.reshape(M, d_model)                  # free reshape; no host-side padding
    b_in2d = b_in.reshape(1, d_mlp).astype(jnp.float32)
    b_out2d = b_out.reshape(1, d_model).astype(jnp.float32)

    cap = _vmem_capacity_bytes()                 # per-TensorCore physical VMEM
    if vmem_budget_bytes is None:
        vmem_budget_bytes = int(0.8 * cap)

    # Resident-weight footprint (weights/biases double-buffered by the pipeline even
    # though their block index is constant -> count them twice).
    tm_res = _round_up(max(8, min(tm or 256, _round_up(M, 8))), 8)
    weight_bytes = ((w_in.size + w_out.size) * w_itemsize
                    + (b_in2d.size + b_out2d.size) * 4)
    resident_need = (2 * weight_bytes
                     + 2 * tm_res * d_model * (x_itemsize + out_itemsize)
                     + tm_res * d_mlp * 4          # f32 pre/post intermediate
                     + tm_res * d_model * 4)       # f32 output accumulate

    tiled = force_tiled or (resident_need > vmem_budget_bytes)

    if not tiled:
        tm_use, tn_use = tm_res, None
        need = resident_need
        bytes_accessed = weight_bytes + M * d_model * (x_itemsize + out_itemsize)
    else:
        tm_auto, tn_auto = _choose_tiled_tiles(
            M, d_model, d_mlp, w_itemsize, x_itemsize, out_itemsize, vmem_budget_bytes)
        tm_use = _round_up(max(8, min(tm, _round_up(M, 8))), 8) if tm is not None else tm_auto
        tn_use = tn if tn is not None else tn_auto
        assert d_mlp % tn_use == 0, "tn must divide d_mlp"
        need = _tiled_need_bytes(tm_use, tn_use, d_model, w_itemsize,
                                 x_itemsize, out_itemsize)
        n_row_tiles = pl.cdiv(M, tm_use)
        # Tiled path re-streams the full weights once per token row-tile.
        bytes_accessed = (n_row_tiles * weight_bytes
                          + M * d_model * (x_itemsize + out_itemsize))

    # Cap at ~90% of the per-TC physical VMEM; leave headroom for compiler scratch.
    vmem_limit_bytes = int(min(0.9 * cap, max(int(need * 1.25) + (16 << 20), 32 << 20)))

    cost = pl.CostEstimate(
        flops=4 * M * d_model * d_mlp,              # two matmuls
        transcendentals=M * d_mlp,                  # tanh over the intermediate
        bytes_accessed=int(bytes_accessed),
    )

    out2d = _build_and_run(
        x2d, w_in, b_in2d, w_out, b_out2d,
        out_dtype=out_dtype, tm=tm_use, tn=tn_use, tiled=tiled,
        vmem_limit_bytes=vmem_limit_bytes, cost_estimate=cost)

    return out2d.reshape(batch, pos, d_model)


def reference_mlp(x, w_in, b_in, w_out, b_out):
    pre = jnp.einsum("bpd,dm->bpm", x, w_in) + b_in
    post = _gelu_new(pre)
    return jnp.einsum("bpm,md->bpd", post, w_out) + b_out


if __name__ == "__main__":
    # Small shapes consistent with the module (MLP over [batch, position, d_model]).
    batch, pos, d_model, d_mlp = 2, 8, 128, 512
    init_range = 0.02

    key = jax.random.PRNGKey(0)
    kx, kwin, kwout = jax.random.split(key, 3)

    x = jax.random.normal(kx, (batch, pos, d_model), dtype=jnp.float32)
    W_in = init_range * jax.random.normal(kwin, (d_model, d_mlp), dtype=jnp.float32)
    b_in = jnp.zeros((d_mlp,), dtype=jnp.float32)
    W_out = init_range * jax.random.normal(kwout, (d_mlp, d_model), dtype=jnp.float32)
    b_out = jnp.zeros((d_model,), dtype=jnp.float32)

    ref = reference_mlp(x, W_in, b_in, W_out, b_out)

    # 1) Default path: bf16 matmuls w/ f32 accumulation, weights resident in VMEM.
    out = jax.block_until_ready(mlp_forward(x, W_in, b_in, W_out, b_out))
    assert out.shape == (batch, pos, d_model)
    assert out.dtype == x.dtype
    assert jnp.allclose(out, ref, atol=2e-2, rtol=2e-2), "bf16 resident path mismatch"

    # 2) f32 compute, resident weights (tight tolerance vs reference).
    out_f32 = jax.block_until_ready(
        mlp_forward(x, W_in, b_in, W_out, b_out, compute_dtype=jnp.float32))
    assert jnp.allclose(out_f32, ref, atol=1e-5, rtol=1e-5), "f32 resident path mismatch"

    # 3) Forced d_mlp-tiled reduction path, f32 (accumulates in-place into o_ref).
    out_tiled = jax.block_until_ready(
        mlp_forward(x, W_in, b_in, W_out, b_out, compute_dtype=jnp.float32,
                    force_tiled=True, tn=256))
    assert jnp.allclose(out_tiled, ref, atol=1e-5, rtol=1e-5), "f32 tiled path mismatch"

    # 4) Forced tiled path with bf16 input/output (exercises the f32 scratch accumulator).
    x_bf16 = x.astype(jnp.bfloat16)
    ref_bf16 = reference_mlp(x_bf16.astype(jnp.float32), W_in, b_in, W_out, b_out)
    out_tb = jax.block_until_ready(
        mlp_forward(x_bf16, W_in, b_in, W_out, b_out, force_tiled=True, tn=256))
    assert out_tb.dtype == jnp.bfloat16
    assert jnp.allclose(out_tb.astype(jnp.float32), ref_bf16, atol=3e-2, rtol=3e-2), \
        "bf16 tiled path mismatch"

    print("KERNEL_OK")
</pallas_src>

<mosaic_0001>
module attributes {stable_mosaic.version = 11 : i64} {
  func.func @_mlp_kernel_resident(%arg0: i32, %arg1: memref<16x128xbf16, #tpu.memory_space<vmem>>, %arg2: memref<128x512xbf16, #tpu.memory_space<vmem>>, %arg3: memref<1x512xf32, #tpu.memory_space<vmem>>, %arg4: memref<512x128xbf16, #tpu.memory_space<vmem>>, %arg5: memref<1x128xf32, #tpu.memory_space<vmem>>, %arg6: memref<16x128xf32, #tpu.memory_space<vmem>>) attributes {dimension_semantics = [#tpu.dimension_semantics<parallel>], iteration_bounds = array<i64: 1>, scalar_prefetch = 0 : i64, scratch_operands = 0 : i64, tpu.core_type = #tpu.core_type<tc>, window_params = [{transform_indices = @transform_0, window_bounds = array<i64: 16, 128>}, {pipeline_mode = #tpu.pipeline_mode<synchronous>, transform_indices = @transform_1, window_bounds = array<i64: 128, 512>}, {pipeline_mode = #tpu.pipeline_mode<synchronous>, transform_indices = @transform_2, window_bounds = array<i64: 1, 512>}, {pipeline_mode = #tpu.pipeline_mode<synchronous>, transform_indices = @transform_3, window_bounds = array<i64: 512, 128>}, {pipeline_mode = #tpu.pipeline_mode<synchronous>, transform_indices = @transform_4, window_bounds = array<i64: 1, 128>}, {transform_indices = @transform_5, window_bounds = array<i64: 16, 128>}]} {
    %c0 = arith.constant 0 : index
    %c0_0 = arith.constant 0 : index
    %0 = vector.load %arg1[%c0, %c0_0] : memref<16x128xbf16, #tpu.memory_space<vmem>>, vector<16x128xbf16>
    %c0_1 = arith.constant 0 : index
    %c0_2 = arith.constant 0 : index
    %1 = vector.load %arg2[%c0_1, %c0_2] : memref<128x512xbf16, #tpu.memory_space<vmem>>, vector<128x512xbf16>
    %cst = arith.constant dense<0.000000e+00> : vector<16x512xf32>
    %2 = tpu.matmul %0, %1, %cst {dimension_numbers = #tpu.dot_dimension_numbers<[1], [0], [0], [1], [0, 0, 1, 1], [], []>} : vector<16x128xbf16>, vector<128x512xbf16>, vector<16x512xf32> -> vector<16x512xf32>
    %c0_3 = arith.constant 0 : index
    %c0_4 = arith.constant 0 : index
    %3 = vector.load %arg3[%c0_3, %c0_4] : memref<1x512xf32, #tpu.memory_space<vmem>>, vector<1x512xf32>
    %4 = vector.broadcast %3 : vector<1x512xf32> to vector<16x512xf32>
    %5 = arith.addf %2, %4 : vector<16x512xf32>
    %cst_5 = arith.constant 5.000000e-01 : f32
    %6 = vector.broadcast %cst_5 : f32 to vector<16x512xf32>
    %7 = arith.mulf %6, %5 : vector<16x512xf32>
    %8 = arith.mulf %5, %5 : vector<16x512xf32>
    %9 = arith.mulf %8, %5 : vector<16x512xf32>
    %cst_6 = arith.constant 4.471500e-02 : f32
    %10 = vector.broadcast %cst_6 : f32 to vector<16x512xf32>
    %11 = arith.mulf %10, %9 : vector<16x512xf32>
    %12 = arith.addf %5, %11 : vector<16x512xf32>
    %cst_7 = arith.constant 0.797884583 : f32
    %13 = vector.broadcast %cst_7 : f32 to vector<16x512xf32>
    %14 = arith.mulf %13, %12 : vector<16x512xf32>
    %15 = math.tanh %14 : vector<16x512xf32>
    %cst_8 = arith.constant 1.000000e+00 : f32
    %16 = vector.broadcast %cst_8 : f32 to vector<16x512xf32>
    %17 = arith.addf %16, %15 : vector<16x512xf32>
    %18 = arith.mulf %7, %17 : vector<16x512xf32>
    %19 = arith.truncf %18 : vector<16x512xf32> to vector<16x512xbf16>
    %c0_9 = arith.constant 0 : index
    %c0_10 = arith.constant 0 : index
    %20 = vector.load %arg4[%c0_9, %c0_10] : memref<512x128xbf16, #tpu.memory_space<vmem>>, vector<512x128xbf16>
    %cst_11 = arith.constant dense<0.000000e+00> : vector<16x128xf32>
    %21 = tpu.matmul %19, %20, %cst_11 {dimension_numbers = #tpu.dot_dimension_numbers<[1], [0], [0], [1], [0, 0, 1, 1], [], []>} : vector<16x512xbf16>, vector<512x128xbf16>, vector<16x128xf32> -> vector<16x128xf32>
    %c0_12 = arith.constant 0 : index
    %c0_13 = arith.constant 0 : index
    %22 = vector.load %arg5[%c0_12, %c0_13] : memref<1x128xf32, #tpu.memory_space<vmem>>, vector<1x128xf32>
    %23 = vector.broadcast %22 : vector<1x128xf32> to vector<16x128xf32>
    %24 = arith.addf %21, %23 : vector<16x128xf32>
    %c0_14 = arith.constant 0 : index
    %c0_15 = arith.constant 0 : index
    %25 = vector.load %arg6[%c0_14, %c0_15] : memref<16x128xf32, #tpu.memory_space<vmem>>, vector<16x128xf32>
    tpu.vector_store %arg6[%c0_14, %c0_15], %24 {strides = array<i32>} : memref<16x128xf32, #tpu.memory_space<vmem>>, vector<16x128xf32>,
    return
  }
  func.func @transform_0(%arg0: i32) -> (i32, i32) {
    %c0_i32 = arith.constant 0 : i32
    %c0_i32_0 = arith.constant 0 : i32
    return %arg0, %c0_i32 : i32, i32
  }
  func.func @transform_1(%arg0: i32) -> (i32, i32) {
    %c0_i32 = arith.constant 0 : i32
    %c0_i32_0 = arith.constant 0 : i32
    %c0_i32_1 = arith.constant 0 : i32
    return %c0_i32, %c0_i32_0 : i32, i32
  }
  func.func @transform_2(%arg0: i32) -> (i32, i32) {
    %c0_i32 = arith.constant 0 : i32
    %c0_i32_0 = arith.constant 0 : i32
    %c0_i32_1 = arith.constant 0 : i32
    return %c0_i32, %c0_i32_0 : i32, i32
  }
  func.func @transform_3(%arg0: i32) -> (i32, i32) {
    %c0_i32 = arith.constant 0 : i32
    %c0_i32_0 = arith.constant 0 : i32
    %c0_i32_1 = arith.constant 0 : i32
    return %c0_i32, %c0_i32_0 : i32, i32
  }
  func.func @transform_4(%arg0: i32) -> (i32, i32) {
    %c0_i32 = arith.constant 0 : i32
    %c0_i32_0 = arith.constant 0 : i32
    %c0_i32_1 = arith.constant 0 : i32
    return %c0_i32, %c0_i32_0 : i32, i32
  }
  func.func @transform_5(%arg0: i32) -> (i32, i32) {
    %c0_i32 = arith.constant 0 : i32
    %c0_i32_0 = arith.constant 0 : i32
    return %arg0, %c0_i32 : i32, i32
  }
}

</mosaic_0001>

<llo_original>
// kernel: tpu_custom_call.1
$region0: #{tpu_custom_call.1}
  #allocation0 [shape = 'u32[]', space=smem, size = 0x4, offset = 0x4, fixed_abs, tag = 'smem constant byte address 0x4 - core index']
  #allocation1 [shape = 'u32[72,128]{1,0:T(1,128)}', space=vmem, size = 0x9000, scoped, tag = 'internal scratch']
  %s0 = inlined_call_operand.hbm [shape: bf16[16,128], index: 0, kind: input, shape index: {}]
  %s1 = inlined_call_operand.hbm [shape: bf16[128,512], index: 1, kind: input, shape index: {}]
  %s2 = inlined_call_operand.hbm [shape: f32[1,512], index: 2, kind: input, shape index: {}]
  %s3 = inlined_call_operand.hbm [shape: bf16[512,128], index: 3, kind: input, shape index: {}]
  %s4 = inlined_call_operand.vmem [shape: f32[1,128], index: 4, kind: input, shape index: {}]
  %s5 = inlined_call_operand.hbm [shape: f32[16,128], index: 5, kind: output, shape index: {}]
  %s6 = sld [smem:[#allocation0]]
  $region46: #{tpu_custom_call.1} parent=0
    _
  %s8 = ssub.s32 1, %s6
  %s9 = scalar_select 0, %s8, %s6
  $region1: #{tpu_custom_call.1} parent=0
    #allocation2 [shape = 'u8[4096]{0}', space=vmem, size = 0x1000, scoped, tag = 'input window, operand 0, single buffered']
    #allocation3 [shape = 's32[1]{0}', space=sflag, size = 0x4, scoped, tag = 'scoped memory for tpu_custom_call.1']
    #allocation4 [shape = 's32[1]{0}', space=sflag, size = 0x4, scoped, tag = 'scoped memory for tpu_custom_call.1']
    #allocation5 [shape = 'u8[131072]{0}', space=vmem, size = 0x20000, scoped, tag = 'input window, operand 1, single buffered']
    #allocation6 [shape = 's32[1]{0}', space=sflag, size = 0x4, scoped, tag = 'scoped memory for tpu_custom_call.1']
    #allocation7 [shape = 'u8[2048]{0}', space=vmem, size = 0x800, scoped, tag = 'input window, operand 2, single buffered']
    #allocation8 [shape = 'u8[131072]{0}', space=vmem, size = 0x20000, scoped, tag = 'input window, operand 3, single buffered']
    #allocation9 [shape = 's32[1]{0}', space=sflag, size = 0x4, scoped, tag = 'scoped memory for tpu_custom_call.1']
    #allocation10 [shape = 'u8[8192]{0}', space=vmem, size = 0x2000, scoped, tag = 'output window, operand 0, single buffered']
    %10 = vsyncpa [#allocation3], 0
    %11 = vsyncpa [#allocation6], 0
    %12 = vsyncpa [#allocation9], 0
    %13 = vsyncpa [#allocation4], 0
    // Predicated region
    $region2: #{tpu_custom_call.1} parent=1 // pred_check
      _
    $region3: #{tpu_custom_call.1} parent=1 // pred_check_branch
      %15 = sbr.rel (0) target = $region5
    $region4: #{tpu_custom_call.1} parent=1 // pred_region
      %17 = vsyncadd [#allocation3], 0
      %s18 = sshll.u32 %s0, 4
      %s19 = int_to_ptr.hbm [resolvable:$true] %s18
      %s20 = sshll.u32 [#allocation2], 4
      %s21 = int_to_ptr.vmem [resolvable:$true] %s20
      %26 = dma.hbm_to_vmem [thread:$0]  %s19, 128, %s21, [#allocation3], 64, 64, 4
    $region5: #{tpu_custom_call.1} parent=1 // pred_fallthru
      _
    // Predicated region
    $region6: #{tpu_custom_call.1} parent=1 // pred_check
      _
    $region7: #{tpu_custom_call.1} parent=1 // pred_check_branch
      %28 = sbr.rel (0) target = $region9
    $region8: #{tpu_custom_call.1} parent=1 // pred_region
      %30 = vsyncadd [#allocation6], 0
      %s31 = sshll.u32 %s1, 4
      %s32 = int_to_ptr.hbm [resolvable:$true] %s31
      %s33 = sshll.u32 [#allocation5], 4
      %s34 = int_to_ptr.vmem [resolvable:$true] %s33
      %39 = dma.hbm_to_vmem [thread:$0]  %s32, 4096, %s34, [#allocation6], 256, 256, 16
    $region9: #{tpu_custom_call.1} parent=1 // pred_fallthru
      _
    // Predicated region
    $region10: #{tpu_custom_call.1} parent=1 // pred_check
      _
    $region11: #{tpu_custom_call.1} parent=1 // pred_check_branch
      %41 = sbr.rel (0) target = $region13
    $region12: #{tpu_custom_call.1} parent=1 // pred_region
      %43 = vsyncadd [#allocation6], 0
      %s45 = sshll.u32 %s2, 4
      %s46 = int_to_ptr.hbm [resolvable:$true] %s45
      %s47 = sshll.u32 [#allocation7], 4
      %s48 = int_to_ptr.vmem [resolvable:$true] %s47
      %50 = dma.hbm_to_vmem [thread:$0]  %s46, 64, %s48, [#allocation6]
    $region13: #{tpu_custom_call.1} parent=1 // pred_fallthru
      _
    // Predicated region
    $region14: #{tpu_custom_call.1} parent=1 // pred_check
      _
    $region15: #{tpu_custom_call.1} parent=1 // pred_check_branch
      %52 = sbr.rel (0) target = $region17
    $region16: #{tpu_custom_call.1} parent=1 // pred_region
      %54 = vsyncadd [#allocation9], 0
      %s55 = sshll.u32 %s3, 4
      %s56 = int_to_ptr.hbm [resolvable:$true] %s55
      %s57 = sshll.u32 [#allocation8], 4
      %s58 = int_to_ptr.vmem [resolvable:$true] %s57
      %63 = dma.hbm_to_vmem [thread:$0]  %s56, 4096, %s58, [#allocation9], 64, 64, 4
    $region17: #{tpu_custom_call.1} parent=1 // pred_fallthru
      _
    // Predicated region
    $region18: #{tpu_custom_call.1} parent=1 // pred_check
      _
    $region19: #{tpu_custom_call.1} parent=1 // pred_check_branch
      %65 = sbr.rel (0) target = $region21
    $region20: #{tpu_custom_call.1} parent=1 // pred_region
      _
    $region21: #{tpu_custom_call.1} parent=1 // pred_fallthru
      _
    // Predicated region
    $region22: #{tpu_custom_call.1} parent=1 // pred_check
      _
    $region23: #{tpu_custom_call.1} parent=1 // pred_check_branch
      %67 = sbr.rel (0) target = $region25
    $region24: #{tpu_custom_call.1} parent=1 // pred_region
      %69 = dma.done [#allocation3], 128
    $region25: #{tpu_custom_call.1} parent=1 // pred_fallthru
      _
    // Predicated region
    $region26: #{tpu_custom_call.1} parent=1 // pred_check
      _
    $region27: #{tpu_custom_call.1} parent=1 // pred_check_branch
      %71 = sbr.rel (0) target = $region29
    $region28: #{tpu_custom_call.1} parent=1 // pred_region
      %73 = dma.done [#allocation6], 4096
    $region29: #{tpu_custom_call.1} parent=1 // pred_fallthru
      _
    // Predicated region
    $region30: #{tpu_custom_call.1} parent=1 // pred_check
      _
    $region31: #{tpu_custom_call.1} parent=1 // pred_check_branch
      %75 = sbr.rel (0) target = $region33
    $region32: #{tpu_custom_call.1} parent=1 // pred_region
      %77 = dma.done [#allocation6], 64
    $region33: #{tpu_custom_call.1} parent=1 // pred_fallthru
      _
    // Predicated region
    $region34: #{tpu_custom_call.1} parent=1 // pred_check
      _
    $region35: #{tpu_custom_call.1} parent=1 // pred_check_branch
      %79 = sbr.rel (0) target = $region37
    $region36: #{tpu_custom_call.1} parent=1 // pred_region
      %81 = dma.done [#allocation9], 4096
    $region37: #{tpu_custom_call.1} parent=1 // pred_fallthru
      _
    %v82 = vld [vmem:[#allocation2] sm:$0xf]
    %v83 = vld [vmem:[#allocation2 + $0x4] sm:$0xf]
    %v84 = vld [vmem:[#allocation5] sm:$0xff]
    %v85 = vld [vmem:[#allocation5 + $0x8] sm:$0xff]
    %v86 = vld [vmem:[#allocation5 + $0x10] sm:$0xff]
    %v87 = vld [vmem:[#allocation5 + $0x18] sm:$0xff]
    %v88 = vld [vmem:[#allocation5 + $0x20] sm:$0xff]
    %v89 = vld [vmem:[#allocation5 + $0x28] sm:$0xff]
    %v90 = vld [vmem:[#allocation5 + $0x30] sm:$0xff]
    %v91 = vld [vmem:[#allocation5 + $0x38] sm:$0xff]
    %v92 = vld [vmem:[#allocation5 + $0x40] sm:$0xff]
    %v93 = vld [vmem:[#allocation5 + $0x48] sm:$0xff]
    %v94 = vld [vmem:[#allocation5 + $0x50] sm:$0xff]
    %v95 = vld [vmem:[#allocation5 + $0x58] sm:$0xff]
    %v96 = vld [vmem:[#allocation5 + $0x60] sm:$0xff]
    %v97 = vld [vmem:[#allocation5 + $0x68] sm:$0xff]
    %v98 = vld [vmem:[#allocation5 + $0x70] sm:$0xff]
    %v99 = vld [vmem:[#allocation5 + $0x78] sm:$0xff]
    %v100 = vld [vmem:[#allocation5 + $0x80] sm:$0xff]
    %v101 = vld [vmem:[#allocation5 + $0x88] sm:$0xff]
    %v102 = vld [vmem:[#allocation5 + $0x90] sm:$0xff]
    %v103 = vld [vmem:[#allocation5 + $0x98] sm:$0xff]
    %v104 = vld [vmem:[#allocation5 + $0xa0] sm:$0xff]
    %v105 = vld [vmem:[#allocation5 + $0xa8] sm:$0xff]
    %v106 = vld [vmem:[#allocation5 + $0xb0] sm:$0xff]
    %v107 = vld [vmem:[#allocation5 + $0xb8] sm:$0xff]
    %v108 = vld [vmem:[#allocation5 + $0xc0] sm:$0xff]
    %v109 = vld [vmem:[#allocation5 + $0xc8] sm:$0xff]
    %v110 = vld [vmem:[#allocation5 + $0xd0] sm:$0xff]
    %v111 = vld [vmem:[#allocation5 + $0xd8] sm:$0xff]
    %v112 = vld [vmem:[#allocation5 + $0xe0] sm:$0xff]
    %v113 = vld [vmem:[#allocation5 + $0xe8] sm:$0xff]
    %v114 = vld [vmem:[#allocation5 + $0xf0] sm:$0xff]
    %v115 = vld [vmem:[#allocation5 + $0xf8] sm:$0xff]
    %v116 = vld [vmem:[#allocation7] sm:$0xf]
    %v118 = vperm.slane %v116, 0
    %v119 = vperm.slane %v116, 1
    %v120 = vperm.slane %v116, 2
    %v121 = vperm.slane %v116, 3
    %v128 = vunpack.c.l.b16 %v82
    %v129 = vunpack.c.l.b16 %v83
    %v130 = vpack.c.b16 %v129, %v128
    %v164 = vunpack.c.l.b16 %v84
    %v165 = vunpack.c.h.b16 %v84
    %v166 = vunpack.c.l.b16 %v85
    %v167 = vunpack.c.h.b16 %v85
    %v168 = vunpack.c.l.b16 %v86
    %v169 = vunpack.c.h.b16 %v86
    %v170 = vunpack.c.l.b16 %v87
    %v171 = vunpack.c.h.b16 %v87
    %v172 = vunpack.c.l.b16 %v88
    %v173 = vunpack.c.h.b16 %v88
    %v174 = vunpack.c.l.b16 %v89
    %v175 = vunpack.c.h.b16 %v89
    %v176 = vunpack.c.l.b16 %v90
    %v177 = vunpack.c.h.b16 %v90
    %v178 = vunpack.c.l.b16 %v91
    %v179 = vunpack.c.h.b16 %v91
    %v180 = vunpack.c.l.b16 %v92
    %v181 = vunpack.c.h.b16 %v92
    %v182 = vunpack.c.l.b16 %v93
    %v183 = vunpack.c.h.b16 %v93
    %v184 = vunpack.c.l.b16 %v94
    %v185 = vunpack.c.h.b16 %v94
    %v186 = vunpack.c.l.b16 %v95
    %v187 = vunpack.c.h.b16 %v95
    %v188 = vunpack.c.l.b16 %v96
    %v189 = vunpack.c.h.b16 %v96
    %v190 = vunpack.c.l.b16 %v97
    %v191 = vunpack.c.h.b16 %v97
    %v192 = vunpack.c.l.b16 %v98
    %v193 = vunpack.c.h.b16 %v98
    %v194 = vunpack.c.l.b16 %v99
    %v195 = vunpack.c.h.b16 %v99
    %v196 = vunpack.c.l.b16 %v100
    %v197 = vunpack.c.h.b16 %v100
    %v198 = vunpack.c.l.b16 %v101
    %v199 = vunpack.c.h.b16 %v101
    %v200 = vunpack.c.l.b16 %v102
    %v201 = vunpack.c.h.b16 %v102
    %v202 = vunpack.c.l.b16 %v103
    %v203 = vunpack.c.h.b16 %v103
    %v204 = vunpack.c.l.b16 %v104
    %v205 = vunpack.c.h.b16 %v104
    %v206 = vunpack.c.l.b16 %v105
    %v207 = vunpack.c.h.b16 %v105
    %v208 = vunpack.c.l.b16 %v106
    %v209 = vunpack.c.h.b16 %v106
    %v210 = vunpack.c.l.b16 %v107
    %v211 = vunpack.c.h.b16 %v107
    %v212 = vunpack.c.l.b16 %v108
    %v213 = vunpack.c.h.b16 %v108
    %v214 = vunpack.c.l.b16 %v109
    %v215 = vunpack.c.h.b16 %v109
    %v216 = vunpack.c.l.b16 %v110
    %v217 = vunpack.c.h.b16 %v110
    %v218 = vunpack.c.l.b16 %v111
    %v219 = vunpack.c.h.b16 %v111
    %v220 = vunpack.c.l.b16 %v112
    %v221 = vunpack.c.h.b16 %v112
    %v222 = vunpack.c.l.b16 %v113
    %v223 = vunpack.c.h.b16 %v113
    %v224 = vunpack.c.l.b16 %v114
    %v225 = vunpack.c.h.b16 %v114
    %v226 = vunpack.c.l.b16 %v115
    %v227 = vunpack.c.h.b16 %v115
    %v228 = vpack.c.b16 %v168, %v164
    %v229 = vpack.c.b16 %v169, %v165
    %v230 = vpack.c.b16 %v170, %v166
    %v231 = vpack.c.b16 %v171, %v167
    %v232 = vpack.c.b16 %v176, %v172
    %v233 = vpack.c.b16 %v177, %v173
    %v234 = vpack.c.b16 %v178, %v174
    %v235 = vpack.c.b16 %v179, %v175
    %v236 = vpack.c.b16 %v184, %v180
    %v237 = vpack.c.b16 %v185, %v181
    %v238 = vpack.c.b16 %v186, %v182
    %v239 = vpack.c.b16 %v187, %v183
    %v240 = vpack.c.b16 %v192, %v188
    %v241 = vpack.c.b16 %v193, %v189
    %v242 = vpack.c.b16 %v194, %v190
    %v243 = vpack.c.b16 %v195, %v191
    %v244 = vpack.c.b16 %v200, %v196
    %v245 = vpack.c.b16 %v201, %v197
    %v246 = vpack.c.b16 %v202, %v198
    %v247 = vpack.c.b16 %v203, %v199
    %v248 = vpack.c.b16 %v208, %v204
    %v249 = vpack.c.b16 %v209, %v205
    %v250 = vpack.c.b16 %v210, %v206
    %v251 = vpack.c.b16 %v211, %v207
    %v252 = vpack.c.b16 %v216, %v212
    %v253 = vpack.c.b16 %v217, %v213
    %v254 = vpack.c.b16 %v218, %v214
    %v255 = vpack.c.b16 %v219, %v215
    %v256 = vpack.c.b16 %v224, %v220
    %v257 = vpack.c.b16 %v225, %v221
    %v258 = vpack.c.b16 %v226, %v222
    %v259 = vpack.c.b16 %v227, %v223
    %292 = vmatpush.bf16.msra.mxu0 %v256
    %293 = vmatpush.bf16.msra.mxu0 %v252
    %294 = vmatpush.bf16.msra.mxu0 %v248
    %295 = vmatpush.bf16.msra.mxu0 %v244
    %296 = vmatpush.bf16.msra.mxu0 %v240
    %297 = vmatpush.bf16.msra.mxu0 %v236
    %298 = vmatpush.bf16.msra.mxu0 %v232
    %299 = vmatpush.bf16.msra.mxu0 %v228
    %300 = vmatmul.bf16.gmra.mxu0 %v130
    %v301 = vpop.f32.mrf.mxu0
    %v302 = vadd.f32 %v118, %v301
    %v303 = vpop.f32.mrf.mxu0
    %v304 = vadd.f32 %v118, %v303
    %305 = vdwg.mxu0
    %306 = vmatpush.bf16.msra.mxu0 %v257
    %307 = vmatpush.bf16.msra.mxu0 %v253
    %308 = vmatpush.bf16.msra.mxu0 %v249
    %309 = vmatpush.bf16.msra.mxu0 %v245
    %310 = vmatpush.bf16.msra.mxu0 %v241
    %311 = vmatpush.bf16.msra.mxu0 %v237
    %312 = vmatpush.bf16.msra.mxu0 %v233
    %313 = vmatpush.bf16.msra.mxu0 %v229
    %314 = vmatmul.bf16.gmra.mxu0 %v130
    %v315 = vpop.f32.mrf.mxu0
    %v316 = vadd.f32 %v119, %v315
    %v317 = vpop.f32.mrf.mxu0
    %v318 = vadd.f32 %v119, %v317
    %319 = vdwg.mxu0
    %320 = vmatpush.bf16.msra.mxu0 %v258
    %321 = vmatpush.bf16.msra.mxu0 %v254
    %322 = vmatpush.bf16.msra.mxu0 %v250
    %323 = vmatpush.bf16.msra.mxu0 %v246
    %324 = vmatpush.bf16.msra.mxu0 %v242
    %325 = vmatpush.bf16.msra.mxu0 %v238
    %326 = vmatpush.bf16.msra.mxu0 %v234
    %327 = vmatpush.bf16.msra.mxu0 %v230
    %328 = vmatmul.bf16.gmra.mxu0 %v130
    %v329 = vpop.f32.mrf.mxu0
    %v330 = vadd.f32 %v120, %v329
    %v331 = vpop.f32.mrf.mxu0
    %v332 = vadd.f32 %v120, %v331
    %333 = vdwg.mxu0
    %334 = vmatpush.bf16.msra.mxu0 %v259
    %335 = vmatpush.bf16.msra.mxu0 %v255
    %336 = vmatpush.bf16.msra.mxu0 %v251
    %337 = vmatpush.bf16.msra.mxu0 %v247
    %338 = vmatpush.bf16.msra.mxu0 %v243
    %339 = vmatpush.bf16.msra.mxu0 %v239
    %340 = vmatpush.bf16.msra.mxu0 %v235
    %341 = vmatpush.bf16.msra.mxu0 %v231
    %342 = vmatmul.bf16.gmra.mxu0 %v130
    %v343 = vpop.f32.mrf.mxu0
    %v344 = vadd.f32 %v121, %v343
    %v345 = vpop.f32.mrf.mxu0
    %v346 = vadd.f32 %v121, %v345
    %347 = vdwg.mxu0
    %v348 = vmul.f32 %v302, 0.5
    %v349 = vmul.f32 %v316, 0.5
    %v350 = vmul.f32 %v330, 0.5
    %v351 = vmul.f32 %v344, 0.5
    %v352 = vmul.f32 %v304, 0.5
    %v353 = vmul.f32 %v318, 0.5
    %v354 = vmul.f32 %v332, 0.5
    %v355 = vmul.f32 %v346, 0.5
    %v356 = vmul.f32 %v302, %v302
    %v357 = vmul.f32 %v316, %v316
    %v358 = vmul.f32 %v330, %v330
    %v359 = vmul.f32 %v344, %v344
    %v360 = vmul.f32 %v304, %v304
    %v361 = vmul.f32 %v318, %v318
    %v362 = vmul.f32 %v332, %v332
    %v363 = vmul.f32 %v346, %v346
    %v364 = vmul.f32 %v356, %v302
    %v365 = vmul.f32 %v357, %v316
    %v366 = vmul.f32 %v358, %v330
    %v367 = vmul.f32 %v359, %v344
    %v368 = vmul.f32 %v360, %v304
    %v369 = vmul.f32 %v361, %v318
    %v370 = vmul.f32 %v362, %v332
    %v371 = vmul.f32 %v363, %v346
    %v372 = vmul.f32 %v364, 0.044715
    %v373 = vmul.f32 %v365, 0.044715
    %v374 = vmul.f32 %v366, 0.044715
    %v375 = vmul.f32 %v367, 0.044715
    %v376 = vmul.f32 %v368, 0.044715
    %v377 = vmul.f32 %v369, 0.044715
    %v378 = vmul.f32 %v370, 0.044715
    %v379 = vmul.f32 %v371, 0.044715
    %v380 = vadd.f32 %v302, %v372
    %v381 = vadd.f32 %v316, %v373
    %v382 = vadd.f32 %v330, %v374
    %v383 = vadd.f32 %v344, %v375
    %v384 = vadd.f32 %v304, %v376
    %v385 = vadd.f32 %v318, %v377
    %v386 = vadd.f32 %v332, %v378
    %v387 = vadd.f32 %v346, %v379
    %v388 = vmul.f32 %v380, 0.7978846
    %v389 = vmul.f32 %v381, 0.7978846
    %v390 = vmul.f32 %v382, 0.7978846
    %v391 = vmul.f32 %v383, 0.7978846
    %v392 = vmul.f32 %v384, 0.7978846
    %v393 = vmul.f32 %v385, 0.7978846
    %v394 = vmul.f32 %v386, 0.7978846
    %v395 = vmul.f32 %v387, 0.7978846
    %v396 = vtanh.pop %v388
    %v397 = vtanh.pop %v389
    %v398 = vtanh.pop %v390
    %v399 = vtanh.pop %v391
    %v400 = vtanh.pop %v392
    %v401 = vtanh.pop %v393
    %v402 = vtanh.pop %v394
    %v403 = vtanh.pop %v395
    %v404 = vadd.f32 %v396, 1.0
    %v405 = vadd.f32 %v397, 1.0
    %v406 = vadd.f32 %v398, 1.0
    %v407 = vadd.f32 %v399, 1.0
    %v408 = vadd.f32 %v400, 1.0
    %v409 = vadd.f32 %v401, 1.0
    %v410 = vadd.f32 %v402, 1.0
    %v411 = vadd.f32 %v403, 1.0
    %v412 = vmul.f32 %v348, %v404
    %v413 = vmul.f32 %v349, %v405
    %v414 = vmul.f32 %v350, %v406
    %v415 = vmul.f32 %v351, %v407
    %v416 = vmul.f32 %v352, %v408
    %v417 = vmul.f32 %v353, %v409
    %v418 = vmul.f32 %v354, %v410
    %v419 = vmul.f32 %v355, %v411
    %v420 = vpack.c.bf16 %v416, %v412
    %v421 = vpack.c.bf16 %v417, %v413
    %v422 = vpack.c.bf16 %v418, %v414
    %v423 = vpack.c.bf16 %v419, %v415
    %v424 = vld [vmem:[#allocation8] sm:$0xf]
    %v425 = vld [vmem:[#allocation8 + $0x4] sm:$0xf]
    %v426 = vld [vmem:[#allocation8 + $0x8] sm:$0xf]
    %v427 = vld [vmem:[#allocation8 + $0xc] sm:$0xf]
    %v428 = vld [vmem:[#allocation8 + $0x10] sm:$0xf]
    %v429 = vld [vmem:[#allocation8 + $0x14] sm:$0xf]
    %v430 = vld [vmem:[#allocation8 + $0x18] sm:$0xf]
    %v431 = vld [vmem:[#allocation8 + $0x1c] sm:$0xf]
    %v432 = vld [vmem:[#allocation8 + $0x20] sm:$0xf]
    %v433 = vld [vmem:[#allocation8 + $0x24] sm:$0xf]
    %v434 = vld [vmem:[#allocation8 + $0x28] sm:$0xf]
    %v435 = vld [vmem:[#allocation8 + $0x2c] sm:$0xf]
    %v436 = vld [vmem:[#allocation8 + $0x30] sm:$0xf]
    %v437 = vld [vmem:[#allocation8 + $0x34] sm:$0xf]
    %v438 = vld [vmem:[#allocation8 + $0x38] sm:$0xf]
    %v439 = vld [vmem:[#allocation8 + $0x3c] sm:$0xf]
    %v440 = vld [vmem:[#allocation8 + $0x40] sm:$0xf]
    %v441 = vld [vmem:[#allocation8 + $0x44] sm:$0xf]
    %v442 = vld [vmem:[#allocation8 + $0x48] sm:$0xf]
    %v443 = vld [vmem:[#allocation8 + $0x4c] sm:$0xf]
    %v444 = vld [vmem:[#allocation8 + $0x50] sm:$0xf]
    %v445 = vld [vmem:[#allocation8 + $0x54] sm:$0xf]
    %v446 = vld [vmem:[#allocation8 + $0x58] sm:$0xf]
    %v447 = vld [vmem:[#allocation8 + $0x5c] sm:$0xf]
    %v448 = vld [vmem:[#allocation8 + $0x60] sm:$0xf]
    %v449 = vld [vmem:[#allocation8 + $0x64] sm:$0xf]
    %v450 = vld [vmem:[#allocation8 + $0x68] sm:$0xf]
    %v451 = vld [vmem:[#allocation8 + $0x6c] sm:$0xf]
    %v452 = vld [vmem:[#allocation8 + $0x70] sm:$0xf]
    %v453 = vld [vmem:[#allocation8 + $0x74] sm:$0xf]
    %v454 = vld [vmem:[#allocation8 + $0x78] sm:$0xf]
    %v455 = vld [vmem:[#allocation8 + $0x7c] sm:$0xf]
    %v456 = vld [vmem:[#allocation8 + $0x80] sm:$0xf]
    %v457 = vld [vmem:[#allocation8 + $0x84] sm:$0xf]
    %v458 = vld [vmem:[#allocation8 + $0x88] sm:$0xf]
    %v459 = vld [vmem:[#allocation8 + $0x8c] sm:$0xf]
    %v460 = vld [vmem:[#allocation8 + $0x90] sm:$0xf]
    %v461 = vld [vmem:[#allocation8 + $0x94] sm:$0xf]
    %v462 = vld [vmem:[#allocation8 + $0x98] sm:$0xf]
    %v463 = vld [vmem:[#allocation8 + $0x9c] sm:$0xf]
    %v464 = vld [vmem:[#allocation8 + $0xa0] sm:$0xf]
    %v465 = vld [vmem:[#allocation8 + $0xa4] sm:$0xf]
    %v466 = vld [vmem:[#allocation8 + $0xa8] sm:$0xf]
    %v467 = vld [vmem:[#allocation8 + $0xac] sm:$0xf]
    %v468 = vld [vmem:[#allocation8 + $0xb0] sm:$0xf]
    %v469 = vld [vmem:[#allocation8 + $0xb4] sm:$0xf]
    %v470 = vld [vmem:[#allocation8 + $0xb8] sm:$0xf]
    %v471 = vld [vmem:[#allocation8 + $0xbc] sm:$0xf]
    %v472 = vld [vmem:[#allocation8 + $0xc0] sm:$0xf]
    %v473 = vld [vmem:[#allocation8 + $0xc4] sm:$0xf]
    %v474 = vld [vmem:[#allocation8 + $0xc8] sm:$0xf]
    %v475 = vld [vmem:[#allocation8 + $0xcc] sm:$0xf]
    %v476 = vld [vmem:[#allocation8 + $0xd0] sm:$0xf]
    %v477 = vld [vmem:[#allocation8 + $0xd4] sm:$0xf]
    %v478 = vld [vmem:[#allocation8 + $0xd8] sm:$0xf]
    %v479 = vld [vmem:[#allocation8 + $0xdc] sm:$0xf]
    %v480 = vld [vmem:[#allocation8 + $0xe0] sm:$0xf]
    %v481 = vld [vmem:[#allocation8 + $0xe4] sm:$0xf]
    %v482 = vld [vmem:[#allocation8 + $0xe8] sm:$0xf]
    %v483 = vld [vmem:[#allocation8 + $0xec] sm:$0xf]
    %v484 = vld [vmem:[#allocation8 + $0xf0] sm:$0xf]
    %v485 = vld [vmem:[#allocation8 + $0xf4] sm:$0xf]
    %v486 = vld [vmem:[#allocation8 + $0xf8] sm:$0xf]
    %v487 = vld [vmem:[#allocation8 + $0xfc] sm:$0xf]
    %v488 = vld [vmem:[%s4] sm:$0x1]
    %v490 = vperm.slane %v488, 0
    %v556 = vunpack.c.l.b16 %v424
    %v557 = vunpack.c.l.b16 %v425
    %v558 = vunpack.c.l.b16 %v426
    %v559 = vunpack.c.l.b16 %v427
    %v560 = vunpack.c.l.b16 %v428
    %v561 = vunpack.c.l.b16 %v429
    %v562 = vunpack.c.l.b16 %v430
    %v563 = vunpack.c.l.b16 %v431
    %v564 = vunpack.c.l.b16 %v432
    %v565 = vunpack.c.l.b16 %v433
    %v566 = vunpack.c.l.b16 %v434
    %v567 = vunpack.c.l.b16 %v435
    %v568 = vunpack.c.l.b16 %v436
    %v569 = vunpack.c.l.b16 %v437
    %v570 = vunpack.c.l.b16 %v438
    %v571 = vunpack.c.l.b16 %v439
    %v572 = vunpack.c.l.b16 %v440
    %v573 = vunpack.c.l.b16 %v441
    %v574 = vunpack.c.l.b16 %v442
    %v575 = vunpack.c.l.b16 %v443
    %v576 = vunpack.c.l.b16 %v444
    %v577 = vunpack.c.l.b16 %v445
    %v578 = vunpack.c.l.b16 %v446
    %v579 = vunpack.c.l.b16 %v447
    %v580 = vunpack.c.l.b16 %v448
    %v581 = vunpack.c.l.b16 %v449
    %v582 = vunpack.c.l.b16 %v450
    %v583 = vunpack.c.l.b16 %v451
    %v584 = vunpack.c.l.b16 %v452
    %v585 = vunpack.c.l.b16 %v453
    %v586 = vunpack.c.l.b16 %v454
    %v587 = vunpack.c.l.b16 %v455
    %v588 = vunpack.c.l.b16 %v456
    %v589 = vunpack.c.l.b16 %v457
    %v590 = vunpack.c.l.b16 %v458
    %v591 = vunpack.c.l.b16 %v459
    %v592 = vunpack.c.l.b16 %v460
    %v593 = vunpack.c.l.b16 %v461
    %v594 = vunpack.c.l.b16 %v462
    %v595 = vunpack.c.l.b16 %v463
    %v596 = vunpack.c.l.b16 %v464
    %v597 = vunpack.c.l.b16 %v465
    %v598 = vunpack.c.l.b16 %v466
    %v599 = vunpack.c.l.b16 %v467
    %v600 = vunpack.c.l.b16 %v468
    %v601 = vunpack.c.l.b16 %v469
    %v602 = vunpack.c.l.b16 %v470
    %v603 = vunpack.c.l.b16 %v471
    %v604 = vunpack.c.l.b16 %v472
    %v605 = vunpack.c.l.b16 %v473
    %v606 = vunpack.c.l.b16 %v474
    %v607 = vunpack.c.l.b16 %v475
    %v608 = vunpack.c.l.b16 %v476
    %v609 = vunpack.c.l.b16 %v477
    %v610 = vunpack.c.l.b16 %v478
    %v611 = vunpack.c.l.b16 %v479
    %v612 = vunpack.c.l.b16 %v480
    %v613 = vunpack.c.l.b16 %v481
    %v614 = vunpack.c.l.b16 %v482
    %v615 = vunpack.c.l.b16 %v483
    %v616 = vunpack.c.l.b16 %v484
    %v617 = vunpack.c.l.b16 %v485
    %v618 = vunpack.c.l.b16 %v486
    %v619 = vunpack.c.l.b16 %v487
    %v620 = vpack.c.b16 %v557, %v556
    %v621 = vpack.c.b16 %v559, %v558
    %v622 = vpack.c.b16 %v561, %v560
    %v623 = vpack.c.b16 %v563, %v562
    %v624 = vpack.c.b16 %v565, %v564
    %v625 = vpack.c.b16 %v567, %v566
    %v626 = vpack.c.b16 %v569, %v568
    %v627 = vpack.c.b16 %v571, %v570
    %v628 = vpack.c.b16 %v573, %v572
    %v629 = vpack.c.b16 %v575, %v574
    %v630 = vpack.c.b16 %v577, %v576
    %v631 = vpack.c.b16 %v579, %v578
    %v632 = vpack.c.b16 %v581, %v580
    %v633 = vpack.c.b16 %v583, %v582
    %v634 = vpack.c.b16 %v585, %v584
    %v635 = vpack.c.b16 %v587, %v586
    %v636 = vpack.c.b16 %v589, %v588
    %v637 = vpack.c.b16 %v591, %v590
    %v638 = vpack.c.b16 %v593, %v592
    %v639 = vpack.c.b16 %v595, %v594
    %v640 = vpack.c.b16 %v597, %v596
    %v641 = vpack.c.b16 %v599, %v598
    %v642 = vpack.c.b16 %v601, %v600
    %v643 = vpack.c.b16 %v603, %v602
    %v644 = vpack.c.b16 %v605, %v604
    %v645 = vpack.c.b16 %v607, %v606
    %v646 = vpack.c.b16 %v609, %v608
    %v647 = vpack.c.b16 %v611, %v610
    %v648 = vpack.c.b16 %v613, %v612
    %v649 = vpack.c.b16 %v615, %v614
    %v650 = vpack.c.b16 %v617, %v616
    %v651 = vpack.c.b16 %v619, %v618
    %684 = vmatpush.bf16.msra.mxu0 %v627
    %685 = vmatpush.bf16.msra.mxu0 %v626
    %686 = vmatpush.bf16.msra.mxu0 %v625
    %687 = vmatpush.bf16.msra.mxu0 %v624
    %688 = vmatpush.bf16.msra.mxu0 %v623
    %689 = vmatpush.bf16.msra.mxu0 %v622
    %690 = vmatpush.bf16.msra.mxu0 %v621
    %691 = vmatpush.bf16.msra.mxu0 %v620
    %692 = vmatmul.bf16.gmra.mxu0 %v420
    %v693 = vpop.f32.mrf.mxu0
    %v694 = vadd.f32 %v490, %v693
    %v695 = vpop.f32.mrf.mxu0
    %v696 = vadd.f32 %v490, %v695
    %697 = vdwg.mxu0
    %698 = vmatpush.bf16.msra.mxu0 %v635
    %699 = vmatpush.bf16.msra.mxu0 %v634
    %700 = vmatpush.bf16.msra.mxu0 %v633
    %701 = vmatpush.bf16.msra.mxu0 %v632
    %702 = vmatpush.bf16.msra.mxu0 %v631
    %703 = vmatpush.bf16.msra.mxu0 %v630
    %704 = vmatpush.bf16.msra.mxu0 %v629
    %705 = vmatpush.bf16.msra.mxu0 %v628
    %706 = vmatmul.bf16.gmra.mxu0 %v421
    %v707 = vpop.f32.mrf.mxu0
    %v708 = vadd.f32 %v694, %v707
    %v709 = vpop.f32.mrf.mxu0
    %v710 = vadd.f32 %v696, %v709
    %711 = vdwg.mxu0
    %712 = vmatpush.bf16.msra.mxu0 %v643
    %713 = vmatpush.bf16.msra.mxu0 %v642
    %714 = vmatpush.bf16.msra.mxu0 %v641
    %715 = vmatpush.bf16.msra.mxu0 %v640
    %716 = vmatpush.bf16.msra.mxu0 %v639
    %717 = vmatpush.bf16.msra.mxu0 %v638
    %718 = vmatpush.bf16.msra.mxu0 %v637
    %719 = vmatpush.bf16.msra.mxu0 %v636
    %720 = vmatmul.bf16.gmra.mxu0 %v422
    %v721 = vpop.f32.mrf.mxu0
    %v722 = vadd.f32 %v708, %v721
    %v723 = vpop.f32.mrf.mxu0
    %v724 = vadd.f32 %v710, %v723
    %725 = vdwg.mxu0
    %726 = vmatpush.bf16.msra.mxu0 %v651
    %727 = vmatpush.bf16.msra.mxu0 %v650
    %728 = vmatpush.bf16.msra.mxu0 %v649
    %729 = vmatpush.bf16.msra.mxu0 %v648
    %730 = vmatpush.bf16.msra.mxu0 %v647
    %731 = vmatpush.bf16.msra.mxu0 %v646
    %732 = vmatpush.bf16.msra.mxu0 %v645
    %733 = vmatpush.bf16.msra.mxu0 %v644
    %734 = vmatmul.bf16.gmra.mxu0 %v423
    %v735 = vpop.f32.mrf.mxu0
    %v736 = vadd.f32 %v722, %v735
    %v737 = vpop.f32.mrf.mxu0
    %v738 = vadd.f32 %v724, %v737
    %739 = vdwg.mxu0
    %740 = vst [vmem:[#allocation10] sm:$0xff] %v736
    %741 = vst [vmem:[#allocation10 + $0x8] sm:$0xff] %v738
    // Predicated region
    $region38: #{tpu_custom_call.1} parent=1 // pred_check
      _
    $region39: #{tpu_custom_call.1} parent=1 // pred_check_branch
      %743 = sbr.rel (0) target = $region41
    $region40: #{tpu_custom_call.1} parent=1 // pred_region
      %745 = vsyncadd [#allocation4], 0
      %s746 = sshll.u32 [#allocation10], 4
      %s747 = int_to_ptr.vmem [resolvable:$true] %s746
      %s748 = sshll.u32 %s5, 4
      %s749 = int_to_ptr.hbm [resolvable:$true] %s748
      %754 = dma.vmem_to_hbm [thread:$0]  %s747, 256, %s749, [#allocation4], 128, 128, 8
    $region41: #{tpu_custom_call.1} parent=1 // pred_fallthru
      _
    // Predicated region
    $region42: #{tpu_custom_call.1} parent=1 // pred_check
      _
    $region43: #{tpu_custom_call.1} parent=1 // pred_check_branch
      %756 = sbr.rel (0) target = $region45
    $region44: #{tpu_custom_call.1} parent=1 // pred_region
      %758 = dma.done [#allocation4], 256
    $region45: #{tpu_custom_call.1} parent=1 // pred_fallthru
      _
    %759 = vsyncpa [#allocation3], 1
    %760 = vsyncpa [#allocation6], 1
    %761 = vsyncpa [#allocation9], 1
    %762 = vsyncpa [#allocation4], 1

</llo_original>
